<compile_context>
chip_gen: v6e
topology: v6e:2x2x1
jax: 0.10.0
libtpu: 0.0.40
codegen_flags: <defaults>
</compile_context>

<pallas_src>
import jax
import jax.numpy as jnp
from jax.experimental import pallas as pl
from jax.experimental.pallas import tpu as pltpu


_FAST_PATH_MAX_B = 256   # single-tile, no-pad path below this batch size
_BT_MAX = 1024           # max batch tile rows for the tiled path


def _round_up(v, m):
    return ((v + m - 1) // m) * m


def _classifier_kernel(x_ref, w1_ref, b1_ref, w2_ref, b2_ref, out_ref, embd_ref):
    # fc1: [bt, in] @ [in, emb] -> f32 accumulate on the MXU, bias add in f32.
    x = x_ref[...]
    embd_f32 = jnp.dot(x, w1_ref[...], preferred_element_type=jnp.float32)
    embd_f32 = embd_f32 + b1_ref[...].astype(jnp.float32)
    embd_ref[...] = embd_f32.astype(embd_ref.dtype)

    # fc2: re-read the just-written embd tile from VMEM (it is already in the
    # module's working dtype, exactly what torch's fc2 would see) so the large
    # f32 intermediate is not kept live across both dots (no vreg spills at
    # big batch tiles).  Accumulate in f32, bias add in f32.
    e = embd_ref[...]
    out_f32 = jnp.dot(e, w2_ref[...], preferred_element_type=jnp.float32)
    out_f32 = out_f32 + b2_ref[...].astype(jnp.float32)
    out_ref[...] = out_f32.astype(out_ref.dtype)


def prepare_classifier_params(w1, b1, w2, b2):
    """One-time parameter preparation (hoisted out of the forward path).

    Inputs use PyTorch nn.Linear layout:
      w1: [emb, in], b1: [emb], w2: [num_classes, emb], b2: [num_classes].
    Returns a dict holding transposed (fast path) and lane-padded (tiled path)
    copies of the parameters.
    """
    emb, in_dim = w1.shape
    nc = w2.shape[0]
    emb_pad = _round_up(emb, 128)
    nc_pad = _round_up(nc, 128)

    w1_t = w1.T                       # [in, emb]
    w2_t = w2.T                       # [emb, nc]
    b1_2d = b1.reshape(1, emb)
    b2_2d = b2.reshape(1, nc)

    return dict(
        in_dim=in_dim, emb=emb, nc=nc, emb_pad=emb_pad, nc_pad=nc_pad,
        # Fast path (small batch): unpadded, transposed.
        w1_t=w1_t, b1=b1_2d, w2_t=w2_t, b2=b2_2d,
        # Tiled path (large batch): lane-dense padding so stores are unmasked
        # vst's.  Zero padding is mathematically inert for both matmuls.
        w1_tp=jnp.pad(w1_t, ((0, 0), (0, emb_pad - emb))),
        b1_p=jnp.pad(b1_2d, ((0, 0), (0, emb_pad - emb))),
        w2_tp=jnp.pad(w2_t, ((0, emb_pad - emb), (0, nc_pad - nc))),
        b2_p=jnp.pad(b2_2d, ((0, 0), (0, nc_pad - nc))),
    )


def _forward_single_tile(x, p):
    """Small-batch fast path: one grid step, full-array blocks, no padding."""
    B, in_dim = x.shape
    emb, nc = p["emb"], p["nc"]
    itemsize = jnp.dtype(x.dtype).itemsize
    flops = 2 * B * (in_dim * emb + emb * nc)
    bytes_accessed = itemsize * (
        B * in_dim + in_dim * emb + emb + emb * nc + nc + B * nc + B * emb
    )

    out, embd = pl.pallas_call(
        _classifier_kernel,
        out_shape=(
            jax.ShapeDtypeStruct((B, nc), x.dtype),
            jax.ShapeDtypeStruct((B, emb), x.dtype),
        ),
        grid=(1,),
        in_specs=[
            pl.BlockSpec((B, in_dim), lambda i: (0, 0)),   # x (full array)
            pl.BlockSpec((in_dim, emb), lambda i: (0, 0)),  # w1
            pl.BlockSpec((1, emb), lambda i: (0, 0)),       # b1
            pl.BlockSpec((emb, nc), lambda i: (0, 0)),      # w2
            pl.BlockSpec((1, nc), lambda i: (0, 0)),        # b2
        ],
        out_specs=[
            pl.BlockSpec((B, nc), lambda i: (0, 0)),
            pl.BlockSpec((B, emb), lambda i: (0, 0)),
        ],
        cost_estimate=pl.CostEstimate(
            flops=flops, transcendentals=0, bytes_accessed=bytes_accessed
        ),
    )(x, p["w1_t"], p["b1"], p["w2_t"], p["b2"])
    return out, embd


def _forward_tiled(x, p):
    """Large-batch path: batch-tiled grid with lane-padded weights/outputs."""
    B, in_dim = x.shape
    emb, nc = p["emb"], p["nc"]
    emb_pad, nc_pad = p["emb_pad"], p["nc_pad"]

    # Balanced tile: >= 2 steps (megacore on v7x), cap at _BT_MAX, sublane
    # aligned.  Padding overshoot stays under one sublane quantum.
    nsteps = max(2, pl.cdiv(B, _BT_MAX))
    bt = _round_up(pl.cdiv(B, nsteps), 8)
    nsteps = pl.cdiv(B, bt)
    b_pad = nsteps * bt

    x_p = jnp.pad(x, ((0, b_pad - B), (0, 0))) if b_pad != B else x

    itemsize = jnp.dtype(x.dtype).itemsize
    flops = 2 * b_pad * (in_dim * emb_pad + emb_pad * nc_pad)
    bytes_accessed = itemsize * (
        b_pad * in_dim + in_dim * emb_pad + emb_pad + emb_pad * nc_pad + nc_pad
        + b_pad * nc_pad + b_pad * emb_pad
    )

    out_p, embd_p = pl.pallas_call(
        _classifier_kernel,
        out_shape=(
            jax.ShapeDtypeStruct((b_pad, nc_pad), x.dtype),
            jax.ShapeDtypeStruct((b_pad, emb_pad), x.dtype),
        ),
        grid=(nsteps,),
        in_specs=[
            pl.BlockSpec((bt, in_dim), lambda i: (i, 0)),       # x tile
            pl.BlockSpec((in_dim, emb_pad), lambda i: (0, 0)),  # w1 resident
            pl.BlockSpec((1, emb_pad), lambda i: (0, 0)),       # b1 resident
            pl.BlockSpec((emb_pad, nc_pad), lambda i: (0, 0)),  # w2 resident
            pl.BlockSpec((1, nc_pad), lambda i: (0, 0)),        # b2 resident
        ],
        out_specs=[
            pl.BlockSpec((bt, nc_pad), lambda i: (i, 0)),
            pl.BlockSpec((bt, emb_pad), lambda i: (i, 0)),
        ],
        compiler_params=pltpu.CompilerParams(
            dimension_semantics=("parallel",),
        ),
        cost_estimate=pl.CostEstimate(
            flops=flops, transcendentals=0, bytes_accessed=bytes_accessed
        ),
    )(x_p, p["w1_tp"], p["b1_p"], p["w2_tp"], p["b2_p"])

    return out_p[:B, :nc], embd_p[:B, :emb]


def classifier_forward(x, params):
    """x: [B, input_size].  Returns (out [B, num_classes], embd [B, emb])."""
    B = x.shape[0]
    if B <= _FAST_PATH_MAX_B:
        return _forward_single_tile(x, params)
    return _forward_tiled(x, params)


if __name__ == "__main__":
    # Module hyperparameters (same defaults as the torch module)
    num_classes = 10
    input_size = 16
    embedding_size = 64

    key = jax.random.PRNGKey(0)
    kx, kw1, kb1, kw2, kb2, kx2 = jax.random.split(key, 6)

    # Deterministic parameter init; shapes match nn.Linear:
    #   fc1.weight: [emb, in], fc1.bias: [emb]
    #   fc2.weight: [num_classes, emb], fc2.bias: [num_classes]
    bound1 = 1.0 / jnp.sqrt(input_size)
    w1 = jax.random.uniform(kw1, (embedding_size, input_size), jnp.float32, -bound1, bound1)
    b1 = jax.random.uniform(kb1, (embedding_size,), jnp.float32, -bound1, bound1)
    bound2 = 1.0 / jnp.sqrt(embedding_size)
    w2 = jax.random.uniform(kw2, (num_classes, embedding_size), jnp.float32, -bound2, bound2)
    b2 = jax.random.uniform(kb2, (num_classes,), jnp.float32, -bound2, bound2)

    # One-time parameter preparation (transpose + pad) — hoisted out of the
    # per-call forward path.
    params = prepare_classifier_params(w1, b1, w2, b2)

    # --- Fast path test (small batch) ---
    batch = 8
    x = jax.random.normal(kx, (batch, input_size), jnp.float32)
    out, embd = classifier_forward(x, params)
    jax.block_until_ready((out, embd))

    embd_ref = x @ w1.T + b1
    out_ref = embd_ref @ w2.T + b2
    assert out.shape == (batch, num_classes) and embd.shape == (batch, embedding_size)
    assert jnp.allclose(embd, embd_ref, atol=1e-5, rtol=1e-5)
    assert jnp.allclose(out, out_ref, atol=1e-5, rtol=1e-5)

    # --- Tiled path test (large batch, non-round size to exercise padding) ---
    batch2 = 300
    x2 = jax.random.normal(kx2, (batch2, input_size), jnp.float32)
    out2, embd2 = classifier_forward(x2, params)
    jax.block_until_ready((out2, embd2))

    embd2_ref = x2 @ w1.T + b1
    out2_ref = embd2_ref @ w2.T + b2
    assert out2.shape == (batch2, num_classes) and embd2.shape == (batch2, embedding_size)
    assert jnp.allclose(embd2, embd2_ref, atol=1e-5, rtol=1e-5)
    assert jnp.allclose(out2, out2_ref, atol=1e-5, rtol=1e-5)

    print("KERNEL_OK")
</pallas_src>

<mosaic_0001>
module attributes {stable_mosaic.version = 11 : i64} {
  func.func @_classifier_kernel(%arg0: i32, %arg1: memref<8x16xf32, #tpu.memory_space<vmem>>, %arg2: memref<16x64xf32, #tpu.memory_space<vmem>>, %arg3: memref<1x64xf32, #tpu.memory_space<vmem>>, %arg4: memref<64x10xf32, #tpu.memory_space<vmem>>, %arg5: memref<1x10xf32, #tpu.memory_space<vmem>>, %arg6: memref<8x10xf32, #tpu.memory_space<vmem>>, %arg7: memref<8x64xf32, #tpu.memory_space<vmem>>) attributes {dimension_semantics = [#tpu.dimension_semantics<arbitrary>], iteration_bounds = array<i64: 1>, scalar_prefetch = 0 : i64, scratch_operands = 0 : i64, tpu.core_type = #tpu.core_type<tc>, window_params = [{pipeline_mode = #tpu.pipeline_mode<synchronous>, transform_indices = @transform_0, window_bounds = array<i64: 8, 16>}, {pipeline_mode = #tpu.pipeline_mode<synchronous>, transform_indices = @transform_1, window_bounds = array<i64: 16, 64>}, {pipeline_mode = #tpu.pipeline_mode<synchronous>, transform_indices = @transform_2, window_bounds = array<i64: 1, 64>}, {pipeline_mode = #tpu.pipeline_mode<synchronous>, transform_indices = @transform_3, window_bounds = array<i64: 64, 10>}, {pipeline_mode = #tpu.pipeline_mode<synchronous>, transform_indices = @transform_4, window_bounds = array<i64: 1, 10>}, {pipeline_mode = #tpu.pipeline_mode<synchronous>, transform_indices = @transform_5, window_bounds = array<i64: 8, 10>}, {pipeline_mode = #tpu.pipeline_mode<synchronous>, transform_indices = @transform_6, window_bounds = array<i64: 8, 64>}]} {
    %c0 = arith.constant 0 : index
    %c0_0 = arith.constant 0 : index
    %0 = vector.load %arg1[%c0, %c0_0] : memref<8x16xf32, #tpu.memory_space<vmem>>, vector<8x16xf32>
    %c0_1 = arith.constant 0 : index
    %c0_2 = arith.constant 0 : index
    %1 = vector.load %arg2[%c0_1, %c0_2] : memref<16x64xf32, #tpu.memory_space<vmem>>, vector<16x64xf32>
    %cst = arith.constant dense<0.000000e+00> : vector<8x64xf32>
    %2 = tpu.matmul %0, %1, %cst {dimension_numbers = #tpu.dot_dimension_numbers<[1], [0], [0], [1], [0, 0, 1, 1], [], []>} : vector<8x16xf32>, vector<16x64xf32>, vector<8x64xf32> -> vector<8x64xf32>
    %c0_3 = arith.constant 0 : index
    %c0_4 = arith.constant 0 : index
    %3 = vector.load %arg3[%c0_3, %c0_4] : memref<1x64xf32, #tpu.memory_space<vmem>>, vector<1x64xf32>
    %4 = vector.broadcast %3 : vector<1x64xf32> to vector<8x64xf32>
    %5 = arith.addf %2, %4 : vector<8x64xf32>
    %c0_5 = arith.constant 0 : index
    %c0_6 = arith.constant 0 : index
    %6 = vector.load %arg7[%c0_5, %c0_6] : memref<8x64xf32, #tpu.memory_space<vmem>>, vector<8x64xf32>
    tpu.vector_store %arg7[%c0_5, %c0_6], %5 {strides = array<i32>} : memref<8x64xf32, #tpu.memory_space<vmem>>, vector<8x64xf32>,
    %c0_7 = arith.constant 0 : index
    %c0_8 = arith.constant 0 : index
    %7 = vector.load %arg7[%c0_7, %c0_8] : memref<8x64xf32, #tpu.memory_space<vmem>>, vector<8x64xf32>
    %c0_9 = arith.constant 0 : index
    %c0_10 = arith.constant 0 : index
    %8 = vector.load %arg4[%c0_9, %c0_10] : memref<64x10xf32, #tpu.memory_space<vmem>>, vector<64x10xf32>
    %cst_11 = arith.constant dense<0.000000e+00> : vector<8x10xf32>
    %9 = tpu.matmul %7, %8, %cst_11 {dimension_numbers = #tpu.dot_dimension_numbers<[1], [0], [0], [1], [0, 0, 1, 1], [], []>} : vector<8x64xf32>, vector<64x10xf32>, vector<8x10xf32> -> vector<8x10xf32>
    %c0_12 = arith.constant 0 : index
    %c0_13 = arith.constant 0 : index
    %10 = vector.load %arg5[%c0_12, %c0_13] : memref<1x10xf32, #tpu.memory_space<vmem>>, vector<1x10xf32>
    %11 = vector.broadcast %10 : vector<1x10xf32> to vector<8x10xf32>
    %12 = arith.addf %9, %11 : vector<8x10xf32>
    %c0_14 = arith.constant 0 : index
    %c0_15 = arith.constant 0 : index
    %13 = vector.load %arg6[%c0_14, %c0_15] : memref<8x10xf32, #tpu.memory_space<vmem>>, vector<8x10xf32>
    tpu.vector_store %arg6[%c0_14, %c0_15], %12 {strides = array<i32>} : memref<8x10xf32, #tpu.memory_space<vmem>>, vector<8x10xf32>,
    return
  }
  func.func @transform_0(%arg0: i32) -> (i32, i32) {
    %c0_i32 = arith.constant 0 : i32
    %c0_i32_0 = arith.constant 0 : i32
    %c0_i32_1 = arith.constant 0 : i32
    return %c0_i32, %c0_i32_0 : i32, i32
  }
  func.func @transform_1(%arg0: i32) -> (i32, i32) {
    %c0_i32 = arith.constant 0 : i32
    %c0_i32_0 = arith.constant 0 : i32
    %c0_i32_1 = arith.constant 0 : i32
    return %c0_i32, %c0_i32_0 : i32, i32
  }
  func.func @transform_2(%arg0: i32) -> (i32, i32) {
    %c0_i32 = arith.constant 0 : i32
    %c0_i32_0 = arith.constant 0 : i32
    %c0_i32_1 = arith.constant 0 : i32
    return %c0_i32, %c0_i32_0 : i32, i32
  }
  func.func @transform_3(%arg0: i32) -> (i32, i32) {
    %c0_i32 = arith.constant 0 : i32
    %c0_i32_0 = arith.constant 0 : i32
    %c0_i32_1 = arith.constant 0 : i32
    return %c0_i32, %c0_i32_0 : i32, i32
  }
  func.func @transform_4(%arg0: i32) -> (i32, i32) {
    %c0_i32 = arith.constant 0 : i32
    %c0_i32_0 = arith.constant 0 : i32
    %c0_i32_1 = arith.constant 0 : i32
    return %c0_i32, %c0_i32_0 : i32, i32
  }
  func.func @transform_5(%arg0: i32) -> (i32, i32) {
    %c0_i32 = arith.constant 0 : i32
    %c0_i32_0 = arith.constant 0 : i32
    %c0_i32_1 = arith.constant 0 : i32
    return %c0_i32, %c0_i32_0 : i32, i32
  }
  func.func @transform_6(%arg0: i32) -> (i32, i32) {
    %c0_i32 = arith.constant 0 : i32
    %c0_i32_0 = arith.constant 0 : i32
    %c0_i32_1 = arith.constant 0 : i32
    return %c0_i32, %c0_i32_0 : i32, i32
  }
}

</mosaic_0001>

<llo_original>
// kernel: tpu_custom_call.1
$region0: #{tpu_custom_call.1}
  #allocation0 [shape = 'u32[]', space=smem, size = 0x4, offset = 0x4, fixed_abs, tag = 'smem constant byte address 0x4 - core index']
  #allocation1 [shape = 'u32[144,128]{1,0:T(1,128)}', space=vmem, size = 0x12000, scoped, tag = 'internal scratch']
  %s0 = inlined_call_operand.vmem [shape: f32[8,16], index: 0, kind: input, shape index: {}]
  %s1 = inlined_call_operand.vmem [shape: f32[16,64], index: 1, kind: input, shape index: {}]
  %s2 = inlined_call_operand.vmem [shape: f32[1,64], index: 2, kind: input, shape index: {}]
  %s3 = inlined_call_operand.vmem [shape: f32[64,10], index: 3, kind: input, shape index: {}]
  %s4 = inlined_call_operand.vmem [shape: f32[1,10], index: 4, kind: input, shape index: {}]
  %s5 = inlined_call_operand.hbm [shape: f32[8,10], index: 5, kind: output, shape index: {0}]
  %s6 = inlined_call_operand.hbm [shape: f32[8,64], index: 6, kind: output, shape index: {1}]
  %7 = xla_tuple %s5, %s6
  %s8 = sld [smem:[#allocation0]]
  $region38: #{tpu_custom_call.1} parent=0
    _
  %s10 = ssub.s32 1, %s8
  %s11 = scalar_select 0, %s10, %s8
  $region1: #{tpu_custom_call.1} parent=0
    #allocation2 [shape = 'u8[4096]{0}', space=vmem, size = 0x1000, scoped, tag = 'output window, operand 0, single buffered']
    #allocation3 [shape = 's32[1]{0}', space=sflag, size = 0x4, scoped, tag = 'scoped memory for tpu_custom_call.1']
    #allocation4 [shape = 'u8[4096]{0}', space=vmem, size = 0x1000, scoped, tag = 'output window, operand 1, single buffered']
    #allocation5 [shape = 's32[1]{0}', space=sflag, size = 0x4, scoped, tag = 'scoped memory for tpu_custom_call.1']
    %12 = vsyncpa [#allocation3], 0
    %13 = vsyncpa [#allocation5], 0
    // Predicated region
    $region2: #{tpu_custom_call.1} parent=1 // pred_check
      _
    $region3: #{tpu_custom_call.1} parent=1 // pred_check_branch
      %15 = sbr.rel (0) target = $region5
    $region4: #{tpu_custom_call.1} parent=1 // pred_region
      _
    $region5: #{tpu_custom_call.1} parent=1 // pred_fallthru
      _
    // Predicated region
    $region6: #{tpu_custom_call.1} parent=1 // pred_check
      _
    $region7: #{tpu_custom_call.1} parent=1 // pred_check_branch
      %17 = sbr.rel (0) target = $region9
    $region8: #{tpu_custom_call.1} parent=1 // pred_region
      _
    $region9: #{tpu_custom_call.1} parent=1 // pred_fallthru
      _
    // Predicated region
    $region10: #{tpu_custom_call.1} parent=1 // pred_check
      _
    $region11: #{tpu_custom_call.1} parent=1 // pred_check_branch
      %19 = sbr.rel (0) target = $region13
    $region12: #{tpu_custom_call.1} parent=1 // pred_region
      _
    $region13: #{tpu_custom_call.1} parent=1 // pred_fallthru
      _
    // Predicated region
    $region14: #{tpu_custom_call.1} parent=1 // pred_check
      _
    $region15: #{tpu_custom_call.1} parent=1 // pred_check_branch
      %21 = sbr.rel (0) target = $region17
    $region16: #{tpu_custom_call.1} parent=1 // pred_region
      _
    $region17: #{tpu_custom_call.1} parent=1 // pred_fallthru
      _
    // Predicated region
    $region18: #{tpu_custom_call.1} parent=1 // pred_check
      _
    $region19: #{tpu_custom_call.1} parent=1 // pred_check_branch
      %23 = sbr.rel (0) target = $region21
    $region20: #{tpu_custom_call.1} parent=1 // pred_region
      _
    $region21: #{tpu_custom_call.1} parent=1 // pred_fallthru
      _
    %v24 = vld [vmem:[%s0] sm:$0xff]
    %v25 = vld [vmem:[%s1] sm:$0xff]
    %v26 = vld [vmem:[%s1 + $0x8] sm:$0xff]
    %v27 = vld [vmem:[%s2] sm:$0x1]
    %v29 = vlaneseq
    %v30 = vshrl.u32 %v29, 7
    %v31 = vsub.s32 0, %v30
    %v32 = vrot.slane %v27, %v31
    %vm34 = vcmask 130048
    %v36 = vsel %vm34, %v24, 0
    %38 = vmatprep.subr.mxu0 0.0
    %39 = vmatpush1.msra.mxu0 0.0
    %40 = vmatprep.subr.mxu0 0.0
    %41 = vmatpush1.msra.mxu0 0.0
    %42 = vmatprep.subr.mxu0 0.0
    %43 = vmatpush1.msra.mxu0 0.0
    %44 = vmatprep.subr.mxu0 0.0
    %45 = vmatpush1.msra.mxu0 0.0
    %46 = vmatprep.subr.mxu0 0.0
    %47 = vmatpush1.msra.mxu0 0.0
    %48 = vmatprep.subr.mxu0 0.0
    %49 = vmatpush1.msra.mxu0 0.0
    %50 = vmatprep.subr.mxu0 0.0
    %51 = vmatpush1.msra.mxu0 0.0
    %52 = vmatprep.subr.mxu0 0.0
    %53 = vmatpush1.msra.mxu0 0.0
    %54 = vmatprep.subr.mxu0 0.0
    %55 = vmatpush1.msra.mxu0 0.0
    %56 = vmatprep.subr.mxu0 0.0
    %57 = vmatpush1.msra.mxu0 0.0
    %58 = vmatprep.subr.mxu0 0.0
    %59 = vmatpush1.msra.mxu0 0.0
    %60 = vmatprep.subr.mxu0 0.0
    %61 = vmatpush1.msra.mxu0 0.0
    %62 = vmatprep.subr.mxu0 0.0
    %63 = vmatpush1.msra.mxu0 0.0
    %64 = vmatprep.subr.mxu0 0.0
    %65 = vmatpush1.msra.mxu0 0.0
    %66 = vmatprep.subr.mxu0 0.0
    %67 = vmatpush1.msra.mxu0 %v26
    %68 = vmatprep.subr.mxu0 0.0
    %69 = vmatpush1.msra.mxu0 %v25
    %70 = vmatprep.subr.mxu0 0.0
    %71 = vmatpush2.msra.mxu0 0.0
    %72 = vmatprep.subr.mxu0 0.0
    %73 = vmatpush2.msra.mxu0 0.0
    %74 = vmatprep.subr.mxu0 0.0
    %75 = vmatpush2.msra.mxu0 0.0
    %76 = vmatprep.subr.mxu0 0.0
    %77 = vmatpush2.msra.mxu0 0.0
    %78 = vmatprep.subr.mxu0 0.0
    %79 = vmatpush2.msra.mxu0 0.0
    %80 = vmatprep.subr.mxu0 0.0
    %81 = vmatpush2.msra.mxu0 0.0
    %82 = vmatprep.subr.mxu0 0.0
    %83 = vmatpush2.msra.mxu0 0.0
    %84 = vmatprep.subr.mxu0 0.0
    %85 = vmatpush2.msra.mxu0 0.0
    %86 = vmatprep.subr.mxu0 0.0
    %87 = vmatpush2.msra.mxu0 0.0
    %88 = vmatprep.subr.mxu0 0.0
    %89 = vmatpush2.msra.mxu0 0.0
    %90 = vmatprep.subr.mxu0 0.0
    %91 = vmatpush2.msra.mxu0 0.0
    %92 = vmatprep.subr.mxu0 0.0
    %93 = vmatpush2.msra.mxu0 0.0
    %94 = vmatprep.subr.mxu0 0.0
    %95 = vmatpush2.msra.mxu0 0.0
    %96 = vmatprep.subr.mxu0 0.0
    %97 = vmatpush2.msra.mxu0 0.0
    %98 = vmatprep.subr.mxu0 0.0
    %99 = vmatpush2.msra.mxu0 0.0
    %100 = vmatprep.subr.mxu0 0.0
    %101 = vmatpush2.msra.mxu0 0.0
    %102 = vmatprep.mubr.f32.mxu0 0.0
    %103 = vmatmul.mubr.f32.gmra.mxu0 %v36
    %v104 = vpop.f32.mrf.mxu0
    %v105 = vadd.f32 %v32, %v104
    %v106 = vpop.f32.mrf.mxu0
    %107 = vdwg.mxu0
    %vm108 = vcmask 523264
    %109 = vst.msk [vmem:[#allocation4] sm:$0xff] %vm108, %v105
    %v110 = vld [vmem:[#allocation4] sm:$0xff]
    %v111 = vld [vmem:[%s3] sm:$0xff]
    %v112 = vld [vmem:[%s3 + $0x8] sm:$0xff]
    %v113 = vld [vmem:[%s3 + $0x10] sm:$0xff]
    %v114 = vld [vmem:[%s3 + $0x18] sm:$0xff]
    %v115 = vld [vmem:[%s3 + $0x20] sm:$0xff]
    %v116 = vld [vmem:[%s3 + $0x28] sm:$0xff]
    %v117 = vld [vmem:[%s3 + $0x30] sm:$0xff]
    %v118 = vld [vmem:[%s3 + $0x38] sm:$0xff]
    %v119 = vld [vmem:[%s4] sm:$0x1]
    %v121 = vlaneseq
    %v122 = vshrl.u32 %v121, 7
    %v123 = vsub.s32 0, %v122
    %v124 = vrot.slane %v119, %v123
    %v127 = vsel %vm108, %v110, 0
    %129 = vmatprep.subr.mxu0 0.0
    %130 = vmatpush1.msra.mxu0 0.0
    %131 = vmatprep.subr.mxu0 0.0
    %132 = vmatpush1.msra.mxu0 0.0
    %133 = vmatprep.subr.mxu0 0.0
    %134 = vmatpush1.msra.mxu0 0.0
    %135 = vmatprep.subr.mxu0 0.0
    %136 = vmatpush1.msra.mxu0 0.0
    %137 = vmatprep.subr.mxu0 0.0
    %138 = vmatpush1.msra.mxu0 0.0
    %139 = vmatprep.subr.mxu0 0.0
    %140 = vmatpush1.msra.mxu0 0.0
    %141 = vmatprep.subr.mxu0 0.0
    %142 = vmatpush1.msra.mxu0 0.0
    %143 = vmatprep.subr.mxu0 0.0
    %144 = vmatpush1.msra.mxu0 0.0
    %145 = vmatprep.subr.mxu0 0.0
    %146 = vmatpush1.msra.mxu0 %v118
    %147 = vmatprep.subr.mxu0 0.0
    %148 = vmatpush1.msra.mxu0 %v117
    %149 = vmatprep.subr.mxu0 0.0
    %150 = vmatpush1.msra.mxu0 %v116
    %151 = vmatprep.subr.mxu0 0.0
    %152 = vmatpush1.msra.mxu0 %v115
    %153 = vmatprep.subr.mxu0 0.0
    %154 = vmatpush1.msra.mxu0 %v114
    %155 = vmatprep.subr.mxu0 0.0
    %156 = vmatpush1.msra.mxu0 %v113
    %157 = vmatprep.subr.mxu0 0.0
    %158 = vmatpush1.msra.mxu0 %v112
    %159 = vmatprep.subr.mxu0 0.0
    %160 = vmatpush1.msra.mxu0 %v111
    %161 = vmatprep.subr.mxu0 0.0
    %162 = vmatpush2.msra.mxu0 0.0
    %163 = vmatprep.subr.mxu0 0.0
    %164 = vmatpush2.msra.mxu0 0.0
    %165 = vmatprep.subr.mxu0 0.0
    %166 = vmatpush2.msra.mxu0 0.0
    %167 = vmatprep.subr.mxu0 0.0
    %168 = vmatpush2.msra.mxu0 0.0
    %169 = vmatprep.subr.mxu0 0.0
    %170 = vmatpush2.msra.mxu0 0.0
    %171 = vmatprep.subr.mxu0 0.0
    %172 = vmatpush2.msra.mxu0 0.0
    %173 = vmatprep.subr.mxu0 0.0
    %174 = vmatpush2.msra.mxu0 0.0
    %175 = vmatprep.subr.mxu0 0.0
    %176 = vmatpush2.msra.mxu0 0.0
    %177 = vmatprep.subr.mxu0 0.0
    %178 = vmatpush2.msra.mxu0 0.0
    %179 = vmatprep.subr.mxu0 0.0
    %180 = vmatpush2.msra.mxu0 0.0
    %181 = vmatprep.subr.mxu0 0.0
    %182 = vmatpush2.msra.mxu0 0.0
    %183 = vmatprep.subr.mxu0 0.0
    %184 = vmatpush2.msra.mxu0 0.0
    %185 = vmatprep.subr.mxu0 0.0
    %186 = vmatpush2.msra.mxu0 0.0
    %187 = vmatprep.subr.mxu0 0.0
    %188 = vmatpush2.msra.mxu0 0.0
    %189 = vmatprep.subr.mxu0 0.0
    %190 = vmatpush2.msra.mxu0 0.0
    %191 = vmatprep.subr.mxu0 0.0
    %192 = vmatpush2.msra.mxu0 0.0
    %193 = vmatprep.mubr.f32.mxu0 0.0
    %194 = vmatmul.mubr.f32.gmra.mxu0 %v127
    %v195 = vpop.f32.mrf.mxu0
    %v196 = vadd.f32 %v124, %v195
    %v197 = vpop.f32.mrf.mxu0
    %198 = vdwg.mxu0
    %vm199 = vcmask 80896
    %200 = vst.msk [vmem:[#allocation2] sm:$0xff] %vm199, %v196
    // Predicated region
    $region22: #{tpu_custom_call.1} parent=1 // pred_check
      _
    $region23: #{tpu_custom_call.1} parent=1 // pred_check_branch
      %202 = sbr.rel (0) target = $region25
    $region24: #{tpu_custom_call.1} parent=1 // pred_region
      %s204 = ssub.s32 128, 128
      %205 = vsyncadd [#allocation3], %s204
      %s207 = sshll.u32 [#allocation2], 4
      %s208 = int_to_ptr.vmem [resolvable:$true] %s207
      %210 = dma.vmem_to_hbm [thread:$0]  %s208, 128, %s5, [#allocation3]
    $region25: #{tpu_custom_call.1} parent=1 // pred_fallthru
      _
    // Predicated region
    $region26: #{tpu_custom_call.1} parent=1 // pred_check
      _
    $region27: #{tpu_custom_call.1} parent=1 // pred_check_branch
      %212 = sbr.rel (0) target = $region29
    $region28: #{tpu_custom_call.1} parent=1 // pred_region
      %s214 = ssub.s32 128, 128
      %215 = vsyncadd [#allocation5], %s214
      %s217 = sshll.u32 [#allocation4], 4
      %s218 = int_to_ptr.vmem [resolvable:$true] %s217
      %220 = dma.vmem_to_hbm [thread:$0]  %s218, 128, %s6, [#allocation5]
    $region29: #{tpu_custom_call.1} parent=1 // pred_fallthru
      _
    // Predicated region
    $region30: #{tpu_custom_call.1} parent=1 // pred_check
      _
    $region31: #{tpu_custom_call.1} parent=1 // pred_check_branch
      %222 = sbr.rel (0) target = $region33
    $region32: #{tpu_custom_call.1} parent=1 // pred_region
      %223 = dma.done [#allocation3], 128
    $region33: #{tpu_custom_call.1} parent=1 // pred_fallthru
      _
    // Predicated region
    $region34: #{tpu_custom_call.1} parent=1 // pred_check
      _
    $region35: #{tpu_custom_call.1} parent=1 // pred_check_branch
      %225 = sbr.rel (0) target = $region37
    $region36: #{tpu_custom_call.1} parent=1 // pred_region
      %226 = dma.done [#allocation5], 128
    $region37: #{tpu_custom_call.1} parent=1 // pred_fallthru
      _
    %227 = vsyncpa [#allocation3], 1
    %228 = vsyncpa [#allocation5], 1

</llo_original>
